<compile_context>
chip_gen: v7x
topology: tpu7x:2x2x1
jax: 0.10.0
libtpu: 0.0.40
codegen_flags: <defaults>
</compile_context>

<pallas_src>
import functools

import jax
import jax.numpy as jnp
from jax.experimental import pallas as pl
from jax.experimental.pallas import tpu as pltpu


def _nconv_kernel(x_ref, a_ref, o_ref, *, compute_dtype=None):
    # x_ref: (block_rows, V*L)   a_ref: (V*L, tile_wl)   o_ref: (block_rows, tile_wl)
    x = x_ref[...]
    a = a_ref[...]
    if compute_dtype is not None:
        # In-kernel cast: keeps HBM traffic at the source dtype while raising
        # effective MXU throughput (f32 accumulation below).
        x = x.astype(compute_dtype)
        a = a.astype(compute_dtype)
    o_ref[...] = jnp.dot(x, a, preferred_element_type=jnp.float32).astype(o_ref.dtype)


def _round_down(v, m):
    return max(m, (int(v) // m) * m)


def nconv(x, A, *, block_rows=None, compute_dtype=None):
    """out = einsum('ncvl,vw->ncwl', x, A) as a Pallas TPU kernel.

    Args:
      x: (N, C, V, L) array.
      A: (V, W) adjacency.
      block_rows: rows of the flattened (N*C, V*L) matrix per grid step.
        Default: generation-aware (~2 MiB of x per step on v7x, ~4 MiB on
        v5e/v6e), the measured sweet spot for this bandwidth-bound op.
      compute_dtype: optional dtype (e.g. jnp.bfloat16) the kernel casts its
        VMEM tiles to right before the MXU dot (f32 accumulation, output cast
        back to x.dtype).  Useful when V*L is large enough to be MXU-bound.
    """
    N, C, V, L = x.shape
    V2, W = A.shape
    assert V2 == V, "A must be (V, W) with V matching x's vertex dimension"

    out_dtype = x.dtype
    itemsize = jnp.dtype(x.dtype).itemsize
    out_itemsize = jnp.dtype(out_dtype).itemsize

    M = N * C
    K = V * L          # contraction width of the fused matmul
    WL = W * L         # lane-dense output width

    # --- operands (no extra HBM passes: free reshape, tiny kron) --------------
    x2 = x.reshape(M, K)
    a_hat = jnp.kron(A.astype(x.dtype), jnp.eye(L, dtype=x.dtype))
    # TODO(synk): for very large V*L, build the kron(A, I_L) tile in-kernel from
    # the tiny (V, W) A (broadcast + iota eye mask) instead of materializing it.

    # --- generation-aware budgets ---------------------------------------------
    try:
        vmem_cap = int(getattr(pltpu.get_tpu_info(), "vmem_capacity_bytes", 64 << 20))
    except Exception:  # noqa: BLE001 - fall back to the most conservative budget
        vmem_cap = 64 << 20
    small_vmem = vmem_cap <= (64 << 20)                 # v7x: 64 MiB / TensorCore
    target_x_bytes = (2 << 20) if small_vmem else (4 << 20)

    # --- row-block sizing ------------------------------------------------------
    row_align = {4: 8, 2: 16, 1: 32}.get(itemsize, 8)
    m_aligned = ((M + row_align - 1) // row_align) * row_align
    if block_rows is None:
        block_rows = target_x_bytes // max(K * itemsize, 1)
        block_rows = max(row_align, min(2048, int(block_rows)))
    block_rows = int(block_rows)
    if block_rows >= 256:
        block_rows = _round_down(block_rows, 256)       # clean MXU M tiling (v6e/v7x)
    else:
        block_rows = _round_down(block_rows, row_align)
    block_rows = min(block_rows, m_aligned)
    # Give a 2-TensorCore chip (v7x) at least a few steps on the parallel axis.
    while pl.cdiv(M, block_rows) < 4 and block_rows > 2 * row_align:
        block_rows = _round_down(block_rows // 2, row_align)

    # --- W-tiling so (V*L, W*L) never blows VMEM -------------------------------
    ahat_budget = 4 << 20
    out_budget = 4 << 20
    tile_wl = min(
        ahat_budget // max(K * itemsize, 1),
        out_budget // max(block_rows * out_itemsize, 1),
    )
    if tile_wl >= WL:
        tile_wl = WL                                    # single resident a_hat tile
    else:
        tile_wl = min(WL, max(128, (int(tile_wl) // 128) * 128))

    grid = (pl.cdiv(M, block_rows), pl.cdiv(WL, tile_wl))

    # --- VMEM limit derived from the actual (double-buffered) blocks -----------
    needed = (
        2 * block_rows * K * itemsize
        + 2 * K * tile_wl * itemsize
        + 2 * block_rows * tile_wl * out_itemsize
    )
    vmem_limit = int(min(max(int(needed * 1.5), 32 << 20), 48 << 20))

    cost = pl.CostEstimate(
        flops=2 * M * K * WL,
        transcendentals=0,
        bytes_accessed=(M * K + K * WL) * itemsize + M * WL * out_itemsize,
    )

    kernel = functools.partial(_nconv_kernel, compute_dtype=compute_dtype)

    out2 = pl.pallas_call(
        kernel,
        out_shape=jax.ShapeDtypeStruct((M, WL), out_dtype),
        grid_spec=pltpu.PrefetchScalarGridSpec(
            num_scalar_prefetch=0,
            grid=grid,
            in_specs=[
                # x: one lane-dense slab of (n, c)-rows; constant across the
                # inner j axis, so it is revisited (no re-DMA) per W tile.
                pl.BlockSpec((block_rows, K), lambda i, j: (i, 0)),
                # a_hat: W-tiled; at small sizes tile_wl == WL and the single
                # tile stays resident across the whole grid.
                pl.BlockSpec((K, tile_wl), lambda i, j: (0, j)),
            ],
            out_specs=pl.BlockSpec((block_rows, tile_wl), lambda i, j: (i, j)),
        ),
        compiler_params=pltpu.CompilerParams(
            # Independent output blocks on both axes; keep j "arbitrary" so the
            # x block revisiting stays on one core, i "parallel" for megacore.
            dimension_semantics=("parallel", "arbitrary"),
            vmem_limit_bytes=vmem_limit,
        ),
        cost_estimate=cost,
    )(x2, a_hat)

    return out2.reshape(N, C, W, L)


if __name__ == "__main__":
    key = jax.random.PRNGKey(0)
    kx, ka = jax.random.split(key)

    N, C, V, L = 2, 4, 16, 16
    x = jax.random.normal(kx, (N, C, V, L), dtype=jnp.float32)
    A = jax.random.normal(ka, (V, V), dtype=jnp.float32)  # square adjacency (W == V)

    out = jax.block_until_ready(nconv(x, A))

    # Reference check against plain-JAX einsum (== torch.einsum('ncvl,vw->ncwl')).
    ref = jnp.einsum("ncvl,vw->ncwl", x, A)
    assert out.shape == ref.shape == (N, C, V, L)
    assert jnp.allclose(out, ref, atol=1e-4, rtol=1e-4)

    print("KERNEL_OK")
</pallas_src>

<mosaic_0001>
module attributes {stable_mosaic.version = 11 : i64} {
  func.func @_nconv_kernel(%arg0: i32, %arg1: i32, %arg2: memref<8x256xf32, #tpu.memory_space<vmem>>, %arg3: memref<256x256xf32, #tpu.memory_space<vmem>>, %arg4: memref<8x256xf32, #tpu.memory_space<vmem>>) attributes {dimension_semantics = [#tpu.dimension_semantics<parallel>, #tpu.dimension_semantics<arbitrary>], iteration_bounds = array<i64: 1, 1>, scalar_prefetch = 0 : i64, scratch_operands = 0 : i64, tpu.core_type = #tpu.core_type<tc>, window_params = [{transform_indices = @transform_0, window_bounds = array<i64: 8, 256>}, {transform_indices = @transform_1, window_bounds = array<i64: 256, 256>}, {transform_indices = @transform_2, window_bounds = array<i64: 8, 256>}]} {
    %c0 = arith.constant 0 : index
    %c0_0 = arith.constant 0 : index
    %0 = vector.load %arg2[%c0, %c0_0] : memref<8x256xf32, #tpu.memory_space<vmem>>, vector<8x256xf32>
    %c0_1 = arith.constant 0 : index
    %c0_2 = arith.constant 0 : index
    %1 = vector.load %arg3[%c0_1, %c0_2] : memref<256x256xf32, #tpu.memory_space<vmem>>, vector<256x256xf32>
    %cst = arith.constant dense<0.000000e+00> : vector<8x256xf32>
    %2 = tpu.matmul %0, %1, %cst {dimension_numbers = #tpu.dot_dimension_numbers<[1], [0], [0], [1], [0, 0, 1, 1], [], []>} : vector<8x256xf32>, vector<256x256xf32>, vector<8x256xf32> -> vector<8x256xf32>
    %c0_3 = arith.constant 0 : index
    %c0_4 = arith.constant 0 : index
    %3 = vector.load %arg4[%c0_3, %c0_4] : memref<8x256xf32, #tpu.memory_space<vmem>>, vector<8x256xf32>
    tpu.vector_store %arg4[%c0_3, %c0_4], %2 {strides = array<i32>} : memref<8x256xf32, #tpu.memory_space<vmem>>, vector<8x256xf32>,
    return
  }
  func.func @transform_0(%arg0: i32, %arg1: i32) -> (i32, i32) {
    %c0_i32 = arith.constant 0 : i32
    %c0_i32_0 = arith.constant 0 : i32
    return %arg0, %c0_i32 : i32, i32
  }
  func.func @transform_1(%arg0: i32, %arg1: i32) -> (i32, i32) {
    %c0_i32 = arith.constant 0 : i32
    %c0_i32_0 = arith.constant 0 : i32
    return %c0_i32, %arg1 : i32, i32
  }
  func.func @transform_2(%arg0: i32, %arg1: i32) -> (i32, i32) {
    %c0_i32 = arith.constant 0 : i32
    return %arg0, %arg1 : i32, i32
  }
}

</mosaic_0001>

<llo_original>
// kernel: tpu_custom_call.1
$region0: #{tpu_custom_call.1}
  #allocation0 [shape = 'u32[]', space=smem, size = 0x4, offset = 0x4, fixed_abs, tag = 'smem constant byte address 0x4 - core index']
  #allocation1 [shape = 'u32[144,128]{1,0:T(1,128)}', space=vmem, size = 0x12000, scoped, tag = 'internal scratch']
  %s0 = inlined_call_operand.hbm [shape: f32[8,256], index: 0, kind: input, shape index: {}]
  %s1 = inlined_call_operand.hbm [shape: f32[256,256], index: 1, kind: input, shape index: {}]
  %s2 = inlined_call_operand.hbm [shape: f32[8,256], index: 2, kind: output, shape index: {}]
  %s3 = sld [smem:[#allocation0]]
  $region26: #{tpu_custom_call.1} parent=0
    _
  %s5 = ssub.s32 1, %s3
  %s6 = scalar_select 0, %s5, %s3
  $region1: #{tpu_custom_call.1} parent=0
    #allocation2 [shape = 'u8[8192]{0}', space=vmem, size = 0x2000, scoped, tag = 'input window, operand 0, single buffered']
    #allocation3 [shape = 's32[1]{0}', space=sflag, size = 0x4, scoped, tag = 'scoped memory for tpu_custom_call.1']
    #allocation4 [shape = 's32[1]{0}', space=sflag, size = 0x4, scoped, tag = 'scoped memory for tpu_custom_call.1']
    #allocation5 [shape = 'u8[262144]{0}', space=vmem, size = 0x40000, scoped, tag = 'input window, operand 1, single buffered']
    #allocation6 [shape = 's32[1]{0}', space=sflag, size = 0x4, scoped, tag = 'scoped memory for tpu_custom_call.1']
    #allocation7 [shape = 'u8[8192]{0}', space=vmem, size = 0x2000, scoped, tag = 'output window, operand 0, single buffered']
    %7 = vsyncpa [#allocation3], 0
    %8 = vsyncpa [#allocation6], 0
    %9 = vsyncpa [#allocation4], 0
    // Predicated region
    $region2: #{tpu_custom_call.1} parent=1 // pred_check
      _
    $region3: #{tpu_custom_call.1} parent=1 // pred_check_branch
      %11 = sbr.rel (0) target = $region5
    $region4: #{tpu_custom_call.1} parent=1 // pred_region
      %s13 = ssub.s32 256, 256
      %14 = vsyncadd [#allocation3], %s13
      %s16 = sshll.u32 [#allocation2], 4
      %s17 = int_to_ptr.vmem [resolvable:$true] %s16
      %19 = dma.hbm_to_vmem [thread:$0]  %s0, 256, %s17, [#allocation3]
    $region5: #{tpu_custom_call.1} parent=1 // pred_fallthru
      _
    // Predicated region
    $region6: #{tpu_custom_call.1} parent=1 // pred_check
      _
    $region7: #{tpu_custom_call.1} parent=1 // pred_check_branch
      %21 = sbr.rel (0) target = $region9
    $region8: #{tpu_custom_call.1} parent=1 // pred_region
      %s23 = ssub.s32 8192, 8192
      %24 = vsyncadd [#allocation6], %s23
      %s25 = sshll.u32 [#allocation5], 4
      %s26 = int_to_ptr.vmem [resolvable:$true] %s25
      %31 = dma.hbm_to_vmem [thread:$0]  %s1, 8192, %s26, [#allocation6], 256, 256, 16
    $region9: #{tpu_custom_call.1} parent=1 // pred_fallthru
      _
    // Predicated region
    $region10: #{tpu_custom_call.1} parent=1 // pred_check
      _
    $region11: #{tpu_custom_call.1} parent=1 // pred_check_branch
      %33 = sbr.rel (0) target = $region13
    $region12: #{tpu_custom_call.1} parent=1 // pred_region
      %34 = dma.done [#allocation3], 256
    $region13: #{tpu_custom_call.1} parent=1 // pred_fallthru
      _
    // Predicated region
    $region14: #{tpu_custom_call.1} parent=1 // pred_check
      _
    $region15: #{tpu_custom_call.1} parent=1 // pred_check_branch
      %36 = sbr.rel (0) target = $region17
    $region16: #{tpu_custom_call.1} parent=1 // pred_region
      %37 = dma.done [#allocation6], 8192
    $region17: #{tpu_custom_call.1} parent=1 // pred_fallthru
      _
    %v38 = vld [vmem:[#allocation2] sm:$0xff]
    %v39 = vld [vmem:[#allocation2 + $0x8] sm:$0xff]
    %v40 = vld [vmem:[#allocation5] sm:$0xff]
    %v41 = vld [vmem:[#allocation5 + $0x8] sm:$0xff]
    %v42 = vld [vmem:[#allocation5 + $0x10] sm:$0xff]
    %v43 = vld [vmem:[#allocation5 + $0x18] sm:$0xff]
    %v44 = vld [vmem:[#allocation5 + $0x20] sm:$0xff]
    %v45 = vld [vmem:[#allocation5 + $0x28] sm:$0xff]
    %v46 = vld [vmem:[#allocation5 + $0x30] sm:$0xff]
    %v47 = vld [vmem:[#allocation5 + $0x38] sm:$0xff]
    %v48 = vld [vmem:[#allocation5 + $0x40] sm:$0xff]
    %v49 = vld [vmem:[#allocation5 + $0x48] sm:$0xff]
    %v50 = vld [vmem:[#allocation5 + $0x50] sm:$0xff]
    %v51 = vld [vmem:[#allocation5 + $0x58] sm:$0xff]
    %v52 = vld [vmem:[#allocation5 + $0x60] sm:$0xff]
    %v53 = vld [vmem:[#allocation5 + $0x68] sm:$0xff]
    %v54 = vld [vmem:[#allocation5 + $0x70] sm:$0xff]
    %v55 = vld [vmem:[#allocation5 + $0x78] sm:$0xff]
    %v56 = vld [vmem:[#allocation5 + $0x80] sm:$0xff]
    %v57 = vld [vmem:[#allocation5 + $0x88] sm:$0xff]
    %v58 = vld [vmem:[#allocation5 + $0x90] sm:$0xff]
    %v59 = vld [vmem:[#allocation5 + $0x98] sm:$0xff]
    %v60 = vld [vmem:[#allocation5 + $0xa0] sm:$0xff]
    %v61 = vld [vmem:[#allocation5 + $0xa8] sm:$0xff]
    %v62 = vld [vmem:[#allocation5 + $0xb0] sm:$0xff]
    %v63 = vld [vmem:[#allocation5 + $0xb8] sm:$0xff]
    %v64 = vld [vmem:[#allocation5 + $0xc0] sm:$0xff]
    %v65 = vld [vmem:[#allocation5 + $0xc8] sm:$0xff]
    %v66 = vld [vmem:[#allocation5 + $0xd0] sm:$0xff]
    %v67 = vld [vmem:[#allocation5 + $0xd8] sm:$0xff]
    %v68 = vld [vmem:[#allocation5 + $0xe0] sm:$0xff]
    %v69 = vld [vmem:[#allocation5 + $0xe8] sm:$0xff]
    %v70 = vld [vmem:[#allocation5 + $0xf0] sm:$0xff]
    %v71 = vld [vmem:[#allocation5 + $0xf8] sm:$0xff]
    %v72 = vld [vmem:[#allocation5 + $0x100] sm:$0xff]
    %v73 = vld [vmem:[#allocation5 + $0x108] sm:$0xff]
    %v74 = vld [vmem:[#allocation5 + $0x110] sm:$0xff]
    %v75 = vld [vmem:[#allocation5 + $0x118] sm:$0xff]
    %v76 = vld [vmem:[#allocation5 + $0x120] sm:$0xff]
    %v77 = vld [vmem:[#allocation5 + $0x128] sm:$0xff]
    %v78 = vld [vmem:[#allocation5 + $0x130] sm:$0xff]
    %v79 = vld [vmem:[#allocation5 + $0x138] sm:$0xff]
    %v80 = vld [vmem:[#allocation5 + $0x140] sm:$0xff]
    %v81 = vld [vmem:[#allocation5 + $0x148] sm:$0xff]
    %v82 = vld [vmem:[#allocation5 + $0x150] sm:$0xff]
    %v83 = vld [vmem:[#allocation5 + $0x158] sm:$0xff]
    %v84 = vld [vmem:[#allocation5 + $0x160] sm:$0xff]
    %v85 = vld [vmem:[#allocation5 + $0x168] sm:$0xff]
    %v86 = vld [vmem:[#allocation5 + $0x170] sm:$0xff]
    %v87 = vld [vmem:[#allocation5 + $0x178] sm:$0xff]
    %v88 = vld [vmem:[#allocation5 + $0x180] sm:$0xff]
    %v89 = vld [vmem:[#allocation5 + $0x188] sm:$0xff]
    %v90 = vld [vmem:[#allocation5 + $0x190] sm:$0xff]
    %v91 = vld [vmem:[#allocation5 + $0x198] sm:$0xff]
    %v92 = vld [vmem:[#allocation5 + $0x1a0] sm:$0xff]
    %v93 = vld [vmem:[#allocation5 + $0x1a8] sm:$0xff]
    %v94 = vld [vmem:[#allocation5 + $0x1b0] sm:$0xff]
    %v95 = vld [vmem:[#allocation5 + $0x1b8] sm:$0xff]
    %v96 = vld [vmem:[#allocation5 + $0x1c0] sm:$0xff]
    %v97 = vld [vmem:[#allocation5 + $0x1c8] sm:$0xff]
    %v98 = vld [vmem:[#allocation5 + $0x1d0] sm:$0xff]
    %v99 = vld [vmem:[#allocation5 + $0x1d8] sm:$0xff]
    %v100 = vld [vmem:[#allocation5 + $0x1e0] sm:$0xff]
    %v101 = vld [vmem:[#allocation5 + $0x1e8] sm:$0xff]
    %v102 = vld [vmem:[#allocation5 + $0x1f0] sm:$0xff]
    %v103 = vld [vmem:[#allocation5 + $0x1f8] sm:$0xff]
    %104 = vmatprep.subr.mxu0 %v41
    %105 = vmatpush1.msra.mxu0 %v40
    %106 = vmatprep.subr.mxu0 %v43
    %107 = vmatpush1.msra.mxu0 %v42
    %108 = vmatprep.subr.mxu0 %v45
    %109 = vmatpush1.msra.mxu0 %v44
    %110 = vmatprep.subr.mxu0 %v47
    %111 = vmatpush1.msra.mxu0 %v46
    %112 = vmatprep.subr.mxu0 %v49
    %113 = vmatpush1.msra.mxu0 %v48
    %114 = vmatprep.subr.mxu0 %v51
    %115 = vmatpush1.msra.mxu0 %v50
    %116 = vmatprep.subr.mxu0 %v53
    %117 = vmatpush1.msra.mxu0 %v52
    %118 = vmatprep.subr.mxu0 %v55
    %119 = vmatpush1.msra.mxu0 %v54
    %120 = vmatprep.subr.mxu0 %v57
    %121 = vmatpush1.msra.mxu0 %v56
    %122 = vmatprep.subr.mxu0 %v59
    %123 = vmatpush1.msra.mxu0 %v58
    %124 = vmatprep.subr.mxu0 %v61
    %125 = vmatpush1.msra.mxu0 %v60
    %126 = vmatprep.subr.mxu0 %v63
    %127 = vmatpush1.msra.mxu0 %v62
    %128 = vmatprep.subr.mxu0 %v65
    %129 = vmatpush1.msra.mxu0 %v64
    %130 = vmatprep.subr.mxu0 %v67
    %131 = vmatpush1.msra.mxu0 %v66
    %132 = vmatprep.subr.mxu0 %v69
    %133 = vmatpush1.msra.mxu0 %v68
    %134 = vmatprep.subr.mxu0 %v71
    %135 = vmatpush1.msra.mxu0 %v70
    %136 = vmatprep.subr.mxu0 %v73
    %137 = vmatpush1.msra.mxu0 %v72
    %138 = vmatprep.subr.mxu0 %v75
    %139 = vmatpush1.msra.mxu0 %v74
    %140 = vmatprep.subr.mxu0 %v77
    %141 = vmatpush1.msra.mxu0 %v76
    %142 = vmatprep.subr.mxu0 %v79
    %143 = vmatpush1.msra.mxu0 %v78
    %144 = vmatprep.subr.mxu0 %v81
    %145 = vmatpush1.msra.mxu0 %v80
    %146 = vmatprep.subr.mxu0 %v83
    %147 = vmatpush1.msra.mxu0 %v82
    %148 = vmatprep.subr.mxu0 %v85
    %149 = vmatpush1.msra.mxu0 %v84
    %150 = vmatprep.subr.mxu0 %v87
    %151 = vmatpush1.msra.mxu0 %v86
    %152 = vmatprep.subr.mxu0 %v89
    %153 = vmatpush1.msra.mxu0 %v88
    %154 = vmatprep.subr.mxu0 %v91
    %155 = vmatpush1.msra.mxu0 %v90
    %156 = vmatprep.subr.mxu0 %v93
    %157 = vmatpush1.msra.mxu0 %v92
    %158 = vmatprep.subr.mxu0 %v95
    %159 = vmatpush1.msra.mxu0 %v94
    %160 = vmatprep.subr.mxu0 %v97
    %161 = vmatpush1.msra.mxu0 %v96
    %162 = vmatprep.subr.mxu0 %v99
    %163 = vmatpush1.msra.mxu0 %v98
    %164 = vmatprep.subr.mxu0 %v101
    %165 = vmatpush1.msra.mxu0 %v100
    %166 = vmatprep.subr.mxu0 %v103
    %167 = vmatpush1.msra.mxu0 %v102
    %168 = vmatprep.mubr.f32.mxu0 %v39
    %169 = vmatmul.mubr.f32.gmra.mrb[0].mxu0 %v38
    %v170 = vpop.f32.mrb[0].mxu0
    %v171 = vadd.f32 0.0, %v170
    %v172 = vpop.f32.mrb[0].mxu0
    %v173 = vadd.f32 0.0, %v172
    %174 = vdwg.mxu0
    %175 = vst [vmem:[#allocation7] sm:$0xff] %v171
    %176 = vst [vmem:[#allocation7 + $0x8] sm:$0xff] %v173
    // Predicated region
    $region18: #{tpu_custom_call.1} parent=1 // pred_check
      _
    $region19: #{tpu_custom_call.1} parent=1 // pred_check_branch
      %178 = sbr.rel (0) target = $region21
    $region20: #{tpu_custom_call.1} parent=1 // pred_region
      %s180 = ssub.s32 256, 256
      %181 = vsyncadd [#allocation4], %s180
      %s183 = sshll.u32 [#allocation7], 4
      %s184 = int_to_ptr.vmem [resolvable:$true] %s183
      %186 = dma.vmem_to_hbm [thread:$0]  %s184, 256, %s2, [#allocation4]
    $region21: #{tpu_custom_call.1} parent=1 // pred_fallthru
      _
    // Predicated region
    $region22: #{tpu_custom_call.1} parent=1 // pred_check
      _
    $region23: #{tpu_custom_call.1} parent=1 // pred_check_branch
      %188 = sbr.rel (0) target = $region25
    $region24: #{tpu_custom_call.1} parent=1 // pred_region
      %189 = dma.done [#allocation4], 256
    $region25: #{tpu_custom_call.1} parent=1 // pred_fallthru
      _
    %190 = vsyncpa [#allocation3], 1
    %191 = vsyncpa [#allocation6], 1
    %192 = vsyncpa [#allocation4], 1

</llo_original>
